<compile_context>
chip_gen: v7x
topology: tpu7x:2x2x1
jax: 0.10.0
libtpu: 0.0.40
codegen_flags: <defaults>
</compile_context>

<pallas_src>
import functools

import jax
import jax.numpy as jnp
from jax.experimental import pallas as pl
from jax.experimental.pallas import tpu as pltpu

C_PAD = 128  # lane-dense logits width (wrapper slices back to num_classes)


def _cnn_text_kernel(x_ref, w_all_ref, b_all_ref, wfc_ref, bfc_ref, out_ref, *,
                     kernel_sizes, kernel_nums, sum_k, max_ks):
    """One batch tile per grid step.

    x_ref    : [TB, S, D]      bf16  embedded tokens for this batch tile
    w_all_ref: [D, COLS_PAD]   bf16  fused conv weights, tap-major columns
    b_all_ref: [1, sum_k]      f32   concatenated conv biases (branch order)
    wfc_ref  : [sum_k, C_PAD]  f32   fc weight (transposed, lane-padded)
    bfc_ref  : [1, C_PAD]      f32   fc bias (lane-padded)
    out_ref  : [TB, C_PAD]     f32   lane-dense logits
    """
    x = x_ref[...]                                   # [TB, S, D] bf16
    TB, S, D = x.shape
    w_all = w_all_ref[...]                           # [D, COLS_PAD] bf16

    # Single fused, lane-dense MXU matmul for every tap of every branch.
    y = jnp.dot(x.reshape(TB * S, D), w_all,
                preferred_element_type=jnp.float32)  # [TB*S, COLS_PAD] f32
    y = y.reshape(TB, S, w_all.shape[1])             # [TB, S, COLS_PAD]

    # Shift-and-add the tap blocks.  The time shift is a sublane rotation
    # (XLU) instead of a sublane-offset slice; rolled[:, t, :] = y[:, t+j, :].
    # Wrap-around rows are masked out below before the max-over-time.
    conv = y[:, :, 0:sum_k]                          # tap 0 block
    for j in range(1, max_ks):                       # max_ks is tiny -> unrolled
        shifted = pltpu.roll(y, shift=S - j, axis=1)
        conv = conv + shifted[:, :, j * sum_k:(j + 1) * sum_k]

    conv = jnp.maximum(conv + b_all_ref[...][None, :, :], 0.0)  # bias + ReLU

    # Per-branch validity mask: a column owned by a branch with kernel size ks
    # is only valid for t < S - ks + 1 (the rest is roll wrap-around).  ReLU
    # output is >= 0, so forcing invalid rows to 0 is neutral for the max.
    t_idx = jax.lax.broadcasted_iota(jnp.int32, (S, sum_k), 0)
    c_idx = jax.lax.broadcasted_iota(jnp.int32, (S, sum_k), 1)
    conds = []
    off = 0
    for ks, K in zip(kernel_sizes, kernel_nums):
        conds.append((c_idx >= off) & (c_idx < off + K) & (t_idx < S - ks + 1))
        off += K
    valid = functools.reduce(jnp.logical_or, conds)
    conv = jnp.where(valid[None, :, :], conv, 0.0)

    # Max over time gives all branch features at once (no cross-lane concat).
    feat = jnp.max(conv, axis=1)                     # [TB, sum_k] f32

    # Dropout is identity in eval mode.  Single fc dot, lane-dense output.
    logits = jnp.dot(feat, wfc_ref[...],
                     preferred_element_type=jnp.float32) + bfc_ref[...]
    out_ref[...] = logits


def _pick_tile_b(S, D, cols_pad, sum_k, weight_bytes,
                 vmem_budget_bytes=24 * 1024 * 1024):
    """Largest batch tile whose working set fits a conservative VMEM budget
    (safe on v7x's 64 MiB and under v5e's raised scoped limit), rounded down
    to a multiple of 8 sublanes and capped at 1024 rows."""
    sumk_lanes = max(128, -(-sum_k // 128) * 128)
    per_row = (2 * S * D * 2            # x tile, bf16, double-buffered
               + 3 * S * cols_pad * 4   # y + live rolled copies (f32)
               + 3 * S * sumk_lanes * 4  # conv / mask / relu temps (f32)
               + 2 * C_PAD * 4)         # padded logits tile, double-buffered
    avail = max(vmem_budget_bytes - 2 * weight_bytes, 8 * per_row)
    return int(max(8, min(1024, (avail // per_row) // 8 * 8)))


def cnn_text_forward(word_seq, params, kernel_sizes=(3, 4, 5)):
    """word_seq: int32 [B, S] token ids. Returns logits [B, num_classes]."""
    kernel_sizes = tuple(kernel_sizes)

    # Embedding lookup in bf16: the kernel consumes bf16, so gathering bf16
    # directly avoids a second HBM pass over [B, S, D].  (In production the
    # table itself should be stored in bf16 so this cast happens once.)
    embed = params['embed']
    if embed.dtype != jnp.bfloat16:
        embed = embed.astype(jnp.bfloat16)
    x_bf = jnp.take(embed, word_seq, axis=0)                 # [B, S, D] bf16
    B, S, D = x_bf.shape
    if S < max(kernel_sizes):
        raise ValueError(
            f"seq_len={S} must be >= max kernel size {max(kernel_sizes)}")

    kernel_nums = tuple(w.shape[-1] for w in params['conv_w'])
    sum_k = sum(kernel_nums)
    max_ks = max(kernel_sizes)
    C = params['fc_b'].shape[-1]

    # --- Fused conv weight, tap-major: column block j holds tap j of every
    # branch (branches with ks <= j get zero columns), lane-padded to 128. ---
    blocks = []
    for j in range(max_ks):
        cols = []
        for w, ks in zip(params['conv_w'], kernel_sizes):
            K = w.shape[-1]
            cols.append(w[j] if j < ks else jnp.zeros((D, K), w.dtype))
        blocks.append(jnp.concatenate(cols, axis=1))          # [D, sum_k]
    w_all = jnp.concatenate(blocks, axis=1)                   # [D, max_ks*sum_k]
    pad = (-w_all.shape[1]) % 128
    if pad:
        w_all = jnp.pad(w_all, ((0, 0), (0, pad)))
    cols_pad = w_all.shape[1]
    w_all_bf = w_all.astype(jnp.bfloat16)                     # MXU operand

    b_all = jnp.concatenate(params['conv_b'], axis=-1)        # [1, sum_k] f32

    # fc padded to 128 output lanes -> lane-dense, unmasked logits stores.
    wfc = jnp.pad(params['fc_w'], ((0, 0), (0, C_PAD - C)))
    bfc = jnp.pad(params['fc_b'], ((0, 0), (0, C_PAD - C)))

    weight_bytes = (w_all_bf.size * 2 + b_all.size * 4
                    + wfc.size * 4 + bfc.size * 4)
    tile_cap = _pick_tile_b(S, D, cols_pad, sum_k, weight_bytes)

    # --- Batch grid: big, VMEM-budgeted tiles; "parallel" axis for megacore.
    Bp8 = -(-B // 8) * 8                                      # sublane-pad B
    tile_b = min(tile_cap, Bp8)
    # v7x has 2 TensorCores: prefer >= 2 grid steps when the batch allows it.
    if tile_b >= Bp8 and Bp8 >= 16:
        tile_b = -(-(Bp8 // 2) // 8) * 8
    n_tiles = -(-Bp8 // tile_b)
    Bp = n_tiles * tile_b
    if Bp > B:
        x_bf = jnp.pad(x_bf, ((0, Bp - B), (0, 0), (0, 0)))

    kernel = functools.partial(
        _cnn_text_kernel, kernel_sizes=kernel_sizes, kernel_nums=kernel_nums,
        sum_k=sum_k, max_ks=max_ks)

    out = pl.pallas_call(
        kernel,
        out_shape=jax.ShapeDtypeStruct((Bp, C_PAD), jnp.float32),
        grid=(n_tiles,),
        in_specs=[
            pl.BlockSpec((tile_b, S, D), lambda i: (i, 0, 0)),    # x tile
            # Weight operands have constant index_maps (DMA'd once).  Single
            # buffering them would return a little VMEM but is negligible at
            # these sizes, so default buffering is kept for portability.
            pl.BlockSpec(w_all_bf.shape, lambda i: (0, 0)),       # fused conv W
            pl.BlockSpec(b_all.shape, lambda i: (0, 0)),          # conv bias
            pl.BlockSpec(wfc.shape, lambda i: (0, 0)),            # fc W
            pl.BlockSpec(bfc.shape, lambda i: (0, 0)),            # fc bias
        ],
        out_specs=pl.BlockSpec((tile_b, C_PAD), lambda i: (i, 0)),
        compiler_params=pltpu.CompilerParams(
            dimension_semantics=("parallel",),
            vmem_limit_bytes=48 * 1024 * 1024),
    )(x_bf, w_all_bf, b_all, wfc, bfc)

    # Padded batch rows / padded lanes are garbage by construction: slice off.
    return out[:B, :C]


def init_params(key, embed_num, embed_dim, num_classes,
                kernel_nums=(8, 8, 8), kernel_sizes=(3, 4, 5)):
    keys = jax.random.split(key, 3 + 2 * len(kernel_sizes))
    params = {}
    params['embed'] = jax.random.normal(keys[0], (embed_num, embed_dim),
                                        jnp.float32) * 0.1
    conv_w, conv_b = [], []
    for i, (K, ks) in enumerate(zip(kernel_nums, kernel_sizes)):
        # PyTorch weight is [K, 1, ks, D]; we keep it as [ks, D, K].
        conv_w.append(jax.random.normal(keys[1 + 2 * i], (ks, embed_dim, K),
                                        jnp.float32) * 0.1)
        conv_b.append(jax.random.normal(keys[2 + 2 * i], (1, K),
                                        jnp.float32) * 0.1)
    params['conv_w'] = conv_w
    params['conv_b'] = conv_b
    sum_k = sum(kernel_nums)
    # PyTorch fc weight is [C, sum_k]; we keep it transposed [sum_k, C].
    params['fc_w'] = jax.random.normal(keys[-2], (sum_k, num_classes),
                                       jnp.float32) * 0.1
    params['fc_b'] = jax.random.normal(keys[-1], (1, num_classes),
                                       jnp.float32) * 0.1
    return params


def reference_forward(word_seq, params, kernel_sizes=(3, 4, 5)):
    """Pure-JAX f32 reference matching the PyTorch forward (eval mode)."""
    x = jnp.take(params['embed'], word_seq, axis=0)          # [B, S, D]
    feats = []
    for i, ks in enumerate(kernel_sizes):
        w = params['conv_w'][i]                              # [ks, D, K]
        b = params['conv_b'][i]                              # [1, K]
        T = x.shape[1] - ks + 1
        conv = sum(jnp.einsum('btd,dk->btk', x[:, j:j + T, :], w[j])
                   for j in range(ks)) + b[None, :, :]
        conv = jnp.maximum(conv, 0.0)
        feats.append(jnp.max(conv, axis=1))                  # [B, K]
    feat = jnp.concatenate(feats, axis=-1)
    return feat @ params['fc_w'] + params['fc_b']


if __name__ == "__main__":
    key = jax.random.PRNGKey(0)
    B, S = 2, 16
    embed_num, embed_dim, num_classes = 50, 32, 4
    kernel_nums, kernel_sizes = (8, 8, 8), (3, 4, 5)

    pkey, dkey = jax.random.split(key)
    params = init_params(pkey, embed_num, embed_dim, num_classes,
                         kernel_nums, kernel_sizes)
    word_seq = jax.random.randint(dkey, (B, S), 0, embed_num, jnp.int32)

    logits = cnn_text_forward(word_seq, params, kernel_sizes)
    logits = jax.block_until_ready(logits)

    ref = reference_forward(word_seq, params, kernel_sizes)
    assert logits.shape == (B, num_classes)
    # bf16 embedding gather + bf16 MXU operands (f32 accumulation) -> slightly
    # looser tolerance vs the f32 reference.
    assert jnp.allclose(logits, ref, atol=2e-2, rtol=2e-2), "mismatch vs reference"

    print("KERNEL_OK")
</pallas_src>

<mosaic_0001>
module attributes {stable_mosaic.version = 11 : i64} {
  func.func @_cnn_text_kernel(%arg0: i32, %arg1: memref<8x16x32xbf16, #tpu.memory_space<vmem>>, %arg2: memref<32x128xbf16, #tpu.memory_space<vmem>>, %arg3: memref<1x24xf32, #tpu.memory_space<vmem>>, %arg4: memref<24x128xf32, #tpu.memory_space<vmem>>, %arg5: memref<1x128xf32, #tpu.memory_space<vmem>>, %arg6: memref<8x128xf32, #tpu.memory_space<vmem>>) attributes {dimension_semantics = [#tpu.dimension_semantics<parallel>], iteration_bounds = array<i64: 1>, scalar_prefetch = 0 : i64, scratch_operands = 0 : i64, tpu.core_type = #tpu.core_type<tc>, window_params = [{transform_indices = @transform_0, window_bounds = array<i64: 8, 16, 32>}, {pipeline_mode = #tpu.pipeline_mode<synchronous>, transform_indices = @transform_1, window_bounds = array<i64: 32, 128>}, {pipeline_mode = #tpu.pipeline_mode<synchronous>, transform_indices = @transform_2, window_bounds = array<i64: 1, 24>}, {pipeline_mode = #tpu.pipeline_mode<synchronous>, transform_indices = @transform_3, window_bounds = array<i64: 24, 128>}, {pipeline_mode = #tpu.pipeline_mode<synchronous>, transform_indices = @transform_4, window_bounds = array<i64: 1, 128>}, {transform_indices = @transform_5, window_bounds = array<i64: 8, 128>}]} {
    %c0 = arith.constant 0 : index
    %c0_0 = arith.constant 0 : index
    %c0_1 = arith.constant 0 : index
    %0 = vector.load %arg1[%c0, %c0_0, %c0_1] : memref<8x16x32xbf16, #tpu.memory_space<vmem>>, vector<8x16x32xbf16>
    %c0_2 = arith.constant 0 : index
    %c0_3 = arith.constant 0 : index
    %1 = vector.load %arg2[%c0_2, %c0_3] : memref<32x128xbf16, #tpu.memory_space<vmem>>, vector<32x128xbf16>
    %2 = vector.shape_cast %0 : vector<8x16x32xbf16> to vector<128x32xbf16>
    %cst = arith.constant dense<0.000000e+00> : vector<128x128xf32>
    %3 = tpu.matmul %2, %1, %cst {dimension_numbers = #tpu.dot_dimension_numbers<[1], [0], [0], [1], [0, 0, 1, 1], [], []>} : vector<128x32xbf16>, vector<32x128xbf16>, vector<128x128xf32> -> vector<128x128xf32>
    %4 = vector.shape_cast %3 : vector<128x128xf32> to vector<8x16x128xf32>
    %5 = vector.extract_strided_slice %4 {offsets = [0, 0, 0], sizes = [8, 16, 24], strides = [1, 1, 1]} : vector<8x16x128xf32> to vector<8x16x24xf32>
    %c15_i32 = arith.constant 15 : i32
    %6 = tpu.dynamic_rotate %4 by %c15_i32 dim 1 : vector<8x16x128xf32>, i32 -> vector<8x16x128xf32>
    %7 = vector.extract_strided_slice %6 {offsets = [0, 0, 24], sizes = [8, 16, 24], strides = [1, 1, 1]} : vector<8x16x128xf32> to vector<8x16x24xf32>
    %8 = arith.addf %5, %7 : vector<8x16x24xf32>
    %c14_i32 = arith.constant 14 : i32
    %9 = tpu.dynamic_rotate %4 by %c14_i32 dim 1 : vector<8x16x128xf32>, i32 -> vector<8x16x128xf32>
    %10 = vector.extract_strided_slice %9 {offsets = [0, 0, 48], sizes = [8, 16, 24], strides = [1, 1, 1]} : vector<8x16x128xf32> to vector<8x16x24xf32>
    %11 = arith.addf %8, %10 : vector<8x16x24xf32>
    %c13_i32 = arith.constant 13 : i32
    %12 = tpu.dynamic_rotate %4 by %c13_i32 dim 1 : vector<8x16x128xf32>, i32 -> vector<8x16x128xf32>
    %13 = vector.extract_strided_slice %12 {offsets = [0, 0, 72], sizes = [8, 16, 24], strides = [1, 1, 1]} : vector<8x16x128xf32> to vector<8x16x24xf32>
    %14 = arith.addf %11, %13 : vector<8x16x24xf32>
    %c12_i32 = arith.constant 12 : i32
    %15 = tpu.dynamic_rotate %4 by %c12_i32 dim 1 : vector<8x16x128xf32>, i32 -> vector<8x16x128xf32>
    %16 = vector.extract_strided_slice %15 {offsets = [0, 0, 96], sizes = [8, 16, 24], strides = [1, 1, 1]} : vector<8x16x128xf32> to vector<8x16x24xf32>
    %17 = arith.addf %14, %16 : vector<8x16x24xf32>
    %c0_4 = arith.constant 0 : index
    %c0_5 = arith.constant 0 : index
    %18 = vector.load %arg3[%c0_4, %c0_5] : memref<1x24xf32, #tpu.memory_space<vmem>>, vector<1x24xf32>
    %19 = vector.shape_cast %18 : vector<1x24xf32> to vector<1x1x24xf32>
    %20 = vector.broadcast %19 : vector<1x1x24xf32> to vector<8x16x24xf32>
    %21 = arith.addf %17, %20 : vector<8x16x24xf32>
    %cst_6 = arith.constant 0.000000e+00 : f32
    %22 = vector.broadcast %cst_6 : f32 to vector<8x16x24xf32>
    %23 = arith.maximumf %21, %22 : vector<8x16x24xf32>
    %24 = tpu.iota {dimensions = array<i32: 0>} : vector<16x24xi32>
    %25 = tpu.iota {dimensions = array<i32: 1>} : vector<16x24xi32>
    %c0_i32 = arith.constant 0 : i32
    %26 = vector.broadcast %c0_i32 : i32 to vector<16x24xi32>
    %27 = arith.cmpi sge, %25, %26 : vector<16x24xi32>
    %c8_i32 = arith.constant 8 : i32
    %28 = vector.broadcast %c8_i32 : i32 to vector<16x24xi32>
    %29 = arith.cmpi slt, %25, %28 : vector<16x24xi32>
    %30 = arith.andi %27, %29 : vector<16x24xi1>
    %c14_i32_7 = arith.constant 14 : i32
    %31 = vector.broadcast %c14_i32_7 : i32 to vector<16x24xi32>
    %32 = arith.cmpi slt, %24, %31 : vector<16x24xi32>
    %33 = arith.andi %30, %32 : vector<16x24xi1>
    %c8_i32_8 = arith.constant 8 : i32
    %34 = vector.broadcast %c8_i32_8 : i32 to vector<16x24xi32>
    %35 = arith.cmpi sge, %25, %34 : vector<16x24xi32>
    %c16_i32 = arith.constant 16 : i32
    %36 = vector.broadcast %c16_i32 : i32 to vector<16x24xi32>
    %37 = arith.cmpi slt, %25, %36 : vector<16x24xi32>
    %38 = arith.andi %35, %37 : vector<16x24xi1>
    %c13_i32_9 = arith.constant 13 : i32
    %39 = vector.broadcast %c13_i32_9 : i32 to vector<16x24xi32>
    %40 = arith.cmpi slt, %24, %39 : vector<16x24xi32>
    %41 = arith.andi %38, %40 : vector<16x24xi1>
    %c16_i32_10 = arith.constant 16 : i32
    %42 = vector.broadcast %c16_i32_10 : i32 to vector<16x24xi32>
    %43 = arith.cmpi sge, %25, %42 : vector<16x24xi32>
    %c24_i32 = arith.constant 24 : i32
    %44 = vector.broadcast %c24_i32 : i32 to vector<16x24xi32>
    %45 = arith.cmpi slt, %25, %44 : vector<16x24xi32>
    %46 = arith.andi %43, %45 : vector<16x24xi1>
    %c12_i32_11 = arith.constant 12 : i32
    %47 = vector.broadcast %c12_i32_11 : i32 to vector<16x24xi32>
    %48 = arith.cmpi slt, %24, %47 : vector<16x24xi32>
    %49 = arith.andi %46, %48 : vector<16x24xi1>
    %50 = arith.ori %33, %41 : vector<16x24xi1>
    %51 = arith.ori %50, %49 : vector<16x24xi1>
    %52 = vector.shape_cast %51 : vector<16x24xi1> to vector<1x16x24xi1>
    %cst_12 = arith.constant 0.000000e+00 : f32
    %53 = vector.shape_cast %52 : vector<1x16x24xi1> to vector<1x16x24xi1>
    %54 = vector.broadcast %53 : vector<1x16x24xi1> to vector<8x16x24xi1>
    %55 = vector.broadcast %cst_12 : f32 to vector<8x16x24xf32>
    %56 = arith.select %54, %23, %55 : vector<8x16x24xi1>, vector<8x16x24xf32>
    %cst_13 = arith.constant dense<0xFF800000> : vector<8x24xf32>
    %57 = vector.multi_reduction <maximumf>, %56, %cst_13 [1] : vector<8x16x24xf32> to vector<8x24xf32>
    %c0_14 = arith.constant 0 : index
    %c0_15 = arith.constant 0 : index
    %58 = vector.load %arg4[%c0_14, %c0_15] : memref<24x128xf32, #tpu.memory_space<vmem>>, vector<24x128xf32>
    %cst_16 = arith.constant dense<0.000000e+00> : vector<8x128xf32>
    %59 = tpu.matmul %57, %58, %cst_16 {dimension_numbers = #tpu.dot_dimension_numbers<[1], [0], [0], [1], [0, 0, 1, 1], [], []>} : vector<8x24xf32>, vector<24x128xf32>, vector<8x128xf32> -> vector<8x128xf32>
    %c0_17 = arith.constant 0 : index
    %c0_18 = arith.constant 0 : index
    %60 = vector.load %arg5[%c0_17, %c0_18] : memref<1x128xf32, #tpu.memory_space<vmem>>, vector<1x128xf32>
    %61 = vector.broadcast %60 : vector<1x128xf32> to vector<8x128xf32>
    %62 = arith.addf %59, %61 : vector<8x128xf32>
    %c0_19 = arith.constant 0 : index
    %c0_20 = arith.constant 0 : index
    %63 = vector.load %arg6[%c0_19, %c0_20] : memref<8x128xf32, #tpu.memory_space<vmem>>, vector<8x128xf32>
    tpu.vector_store %arg6[%c0_19, %c0_20], %62 {strides = array<i32>} : memref<8x128xf32, #tpu.memory_space<vmem>>, vector<8x128xf32>,
    return
  }
  func.func @transform_0(%arg0: i32) -> (i32, i32, i32) {
    %c0_i32 = arith.constant 0 : i32
    %c0_i32_0 = arith.constant 0 : i32
    %c0_i32_1 = arith.constant 0 : i32
    return %arg0, %c0_i32, %c0_i32_0 : i32, i32, i32
  }
  func.func @transform_1(%arg0: i32) -> (i32, i32) {
    %c0_i32 = arith.constant 0 : i32
    %c0_i32_0 = arith.constant 0 : i32
    %c0_i32_1 = arith.constant 0 : i32
    return %c0_i32, %c0_i32_0 : i32, i32
  }
  func.func @transform_2(%arg0: i32) -> (i32, i32) {
    %c0_i32 = arith.constant 0 : i32
    %c0_i32_0 = arith.constant 0 : i32
    %c0_i32_1 = arith.constant 0 : i32
    return %c0_i32, %c0_i32_0 : i32, i32
  }
  func.func @transform_3(%arg0: i32) -> (i32, i32) {
    %c0_i32 = arith.constant 0 : i32
    %c0_i32_0 = arith.constant 0 : i32
    %c0_i32_1 = arith.constant 0 : i32
    return %c0_i32, %c0_i32_0 : i32, i32
  }
  func.func @transform_4(%arg0: i32) -> (i32, i32) {
    %c0_i32 = arith.constant 0 : i32
    %c0_i32_0 = arith.constant 0 : i32
    %c0_i32_1 = arith.constant 0 : i32
    return %c0_i32, %c0_i32_0 : i32, i32
  }
  func.func @transform_5(%arg0: i32) -> (i32, i32) {
    %c0_i32 = arith.constant 0 : i32
    %c0_i32_0 = arith.constant 0 : i32
    return %arg0, %c0_i32 : i32, i32
  }
}

</mosaic_0001>

<llo_original>
// kernel: tpu_custom_call.1
$region0: #{tpu_custom_call.1}
  #allocation0 [shape = 'u32[]', space=smem, size = 0x4, offset = 0x4, fixed_abs, tag = 'smem constant byte address 0x4 - core index']
  #allocation1 [shape = 'u32[144,128]{1,0:T(1,128)}', space=vmem, size = 0x12000, scoped, tag = 'internal scratch']
  %s0 = inlined_call_operand.hbm [shape: bf16[8,16,32], index: 0, kind: input, shape index: {}]
  %s1 = inlined_call_operand.hbm [shape: bf16[32,128], index: 1, kind: input, shape index: {}]
  %s2 = inlined_call_operand.vmem [shape: f32[1,24], index: 2, kind: input, shape index: {}]
  %s3 = inlined_call_operand.hbm [shape: f32[24,128], index: 3, kind: input, shape index: {}]
  %s4 = inlined_call_operand.vmem [shape: f32[1,128], index: 4, kind: input, shape index: {}]
  %s5 = inlined_call_operand.hbm [shape: f32[8,128], index: 5, kind: output, shape index: {}]
  %s6 = sld [smem:[#allocation0]]
  $region42: #{tpu_custom_call.1} parent=0
    _
  %s8 = ssub.s32 1, %s6
  %s9 = scalar_select 0, %s8, %s6
  $region1: #{tpu_custom_call.1} parent=0
    #allocation2 [shape = 'u8[32768]{0}', space=vmem, size = 0x8000, scoped, tag = 'input window, operand 0, single buffered']
    #allocation3 [shape = 's32[1]{0}', space=sflag, size = 0x4, scoped, tag = 'scoped memory for tpu_custom_call.1']
    #allocation4 [shape = 's32[1]{0}', space=sflag, size = 0x4, scoped, tag = 'scoped memory for tpu_custom_call.1']
    #allocation5 [shape = 'u8[8192]{0}', space=vmem, size = 0x2000, scoped, tag = 'input window, operand 1, single buffered']
    #allocation6 [shape = 's32[1]{0}', space=sflag, size = 0x4, scoped, tag = 'scoped memory for tpu_custom_call.1']
    #allocation7 [shape = 'u8[12288]{0}', space=vmem, size = 0x3000, scoped, tag = 'input window, operand 3, single buffered']
    #allocation8 [shape = 'u8[4096]{0}', space=vmem, size = 0x1000, scoped, tag = 'output window, operand 0, single buffered']
    %10 = vsyncpa [#allocation3], 0
    %11 = vsyncpa [#allocation6], 0
    %12 = vsyncpa [#allocation4], 0
    // Predicated region
    $region2: #{tpu_custom_call.1} parent=1 // pred_check
      _
    $region3: #{tpu_custom_call.1} parent=1 // pred_check_branch
      %14 = sbr.rel (0) target = $region5
    $region4: #{tpu_custom_call.1} parent=1 // pred_region
      %s16 = ssub.s32 1024, 1024
      %17 = vsyncadd [#allocation3], %s16
      %s18 = sshll.u32 [#allocation2], 4
      %s19 = int_to_ptr.vmem [resolvable:$true] %s18
      %24 = dma.hbm_to_vmem [thread:$0]  %s0, 1024, %s19, [#allocation3], 64, 64, 4
    $region5: #{tpu_custom_call.1} parent=1 // pred_fallthru
      _
    // Predicated region
    $region6: #{tpu_custom_call.1} parent=1 // pred_check
      _
    $region7: #{tpu_custom_call.1} parent=1 // pred_check_branch
      %26 = sbr.rel (0) target = $region9
    $region8: #{tpu_custom_call.1} parent=1 // pred_region
      %s28 = ssub.s32 256, 256
      %29 = vsyncadd [#allocation6], %s28
      %s30 = sshll.u32 [#allocation5], 4
      %s31 = int_to_ptr.vmem [resolvable:$true] %s30
      %36 = dma.hbm_to_vmem [thread:$0]  %s1, 256, %s31, [#allocation6], 64, 64, 4
    $region9: #{tpu_custom_call.1} parent=1 // pred_fallthru
      _
    // Predicated region
    $region10: #{tpu_custom_call.1} parent=1 // pred_check
      _
    $region11: #{tpu_custom_call.1} parent=1 // pred_check_branch
      %38 = sbr.rel (0) target = $region13
    $region12: #{tpu_custom_call.1} parent=1 // pred_region
      _
    $region13: #{tpu_custom_call.1} parent=1 // pred_fallthru
      _
    // Predicated region
    $region14: #{tpu_custom_call.1} parent=1 // pred_check
      _
    $region15: #{tpu_custom_call.1} parent=1 // pred_check_branch
      %40 = sbr.rel (0) target = $region17
    $region16: #{tpu_custom_call.1} parent=1 // pred_region
      %s42 = ssub.s32 384, 384
      %43 = vsyncadd [#allocation6], %s42
      %s44 = sshll.u32 [#allocation7], 4
      %s45 = int_to_ptr.vmem [resolvable:$true] %s44
      %50 = dma.hbm_to_vmem [thread:$0]  %s3, 384, %s45, [#allocation6], 128, 128, 8
    $region17: #{tpu_custom_call.1} parent=1 // pred_fallthru
      _
    // Predicated region
    $region18: #{tpu_custom_call.1} parent=1 // pred_check
      _
    $region19: #{tpu_custom_call.1} parent=1 // pred_check_branch
      %52 = sbr.rel (0) target = $region21
    $region20: #{tpu_custom_call.1} parent=1 // pred_region
      _
    $region21: #{tpu_custom_call.1} parent=1 // pred_fallthru
      _
    // Predicated region
    $region22: #{tpu_custom_call.1} parent=1 // pred_check
      _
    $region23: #{tpu_custom_call.1} parent=1 // pred_check_branch
      %54 = sbr.rel (0) target = $region25
    $region24: #{tpu_custom_call.1} parent=1 // pred_region
      %55 = dma.done [#allocation3], 1024
    $region25: #{tpu_custom_call.1} parent=1 // pred_fallthru
      _
    // Predicated region
    $region26: #{tpu_custom_call.1} parent=1 // pred_check
      _
    $region27: #{tpu_custom_call.1} parent=1 // pred_check_branch
      %57 = sbr.rel (0) target = $region29
    $region28: #{tpu_custom_call.1} parent=1 // pred_region
      %58 = dma.done [#allocation6], 256
    $region29: #{tpu_custom_call.1} parent=1 // pred_fallthru
      _
    // Predicated region
    $region30: #{tpu_custom_call.1} parent=1 // pred_check
      _
    $region31: #{tpu_custom_call.1} parent=1 // pred_check_branch
      %60 = sbr.rel (0) target = $region33
    $region32: #{tpu_custom_call.1} parent=1 // pred_region
      %61 = dma.done [#allocation6], 384
    $region33: #{tpu_custom_call.1} parent=1 // pred_fallthru
      _
    %v63 = vld [vmem:[#allocation2] sm:$0xf]
    %v64 = vld [vmem:[#allocation2 + $0x4] sm:$0xf]
    %v65 = vld [vmem:[#allocation2 + $0x8] sm:$0xf]
    %v66 = vld [vmem:[#allocation2 + $0xc] sm:$0xf]
    %v67 = vld [vmem:[#allocation2 + $0x10] sm:$0xf]
    %v68 = vld [vmem:[#allocation2 + $0x14] sm:$0xf]
    %v69 = vld [vmem:[#allocation2 + $0x18] sm:$0xf]
    %v70 = vld [vmem:[#allocation2 + $0x1c] sm:$0xf]
    %v71 = vld [vmem:[#allocation2 + $0x20] sm:$0xf]
    %v72 = vld [vmem:[#allocation2 + $0x24] sm:$0xf]
    %v73 = vld [vmem:[#allocation2 + $0x28] sm:$0xf]
    %v74 = vld [vmem:[#allocation2 + $0x2c] sm:$0xf]
    %v75 = vld [vmem:[#allocation2 + $0x30] sm:$0xf]
    %v76 = vld [vmem:[#allocation2 + $0x34] sm:$0xf]
    %v77 = vld [vmem:[#allocation2 + $0x38] sm:$0xf]
    %v78 = vld [vmem:[#allocation2 + $0x3c] sm:$0xf]
    %v79 = vld [vmem:[#allocation5] sm:$0xf]
    %v80 = vld [vmem:[#allocation5 + $0x4] sm:$0xf]
    %v81 = vld [vmem:[#allocation5 + $0x8] sm:$0xf]
    %v82 = vld [vmem:[#allocation5 + $0xc] sm:$0xf]
    %v99 = vunpack.c.l.b16 %v63
    %v100 = vunpack.c.l.b16 %v64
    %v101 = vunpack.c.l.b16 %v65
    %v102 = vunpack.c.l.b16 %v66
    %v103 = vunpack.c.l.b16 %v67
    %v104 = vunpack.c.l.b16 %v68
    %v105 = vunpack.c.l.b16 %v69
    %v106 = vunpack.c.l.b16 %v70
    %v107 = vunpack.c.l.b16 %v71
    %v108 = vunpack.c.l.b16 %v72
    %v109 = vunpack.c.l.b16 %v73
    %v110 = vunpack.c.l.b16 %v74
    %v111 = vunpack.c.l.b16 %v75
    %v112 = vunpack.c.l.b16 %v76
    %v113 = vunpack.c.l.b16 %v77
    %v114 = vunpack.c.l.b16 %v78
    %v115 = vpack.c.b16 %v100, %v99
    %v116 = vpack.c.b16 %v102, %v101
    %v117 = vpack.c.b16 %v104, %v103
    %v118 = vpack.c.b16 %v106, %v105
    %v119 = vpack.c.b16 %v108, %v107
    %v120 = vpack.c.b16 %v110, %v109
    %v121 = vpack.c.b16 %v112, %v111
    %v122 = vpack.c.b16 %v114, %v113
    %v127 = vunpack.c.l.b16 %v79
    %v128 = vunpack.c.l.b16 %v80
    %v129 = vunpack.c.l.b16 %v81
    %v130 = vunpack.c.l.b16 %v82
    %v131 = vpack.c.b16 %v128, %v127
    %v132 = vpack.c.b16 %v130, %v129
    %vm135 = vcmask 261120
    %v137 = vsel %vm135, %v115, 0
    %v140 = vsel %vm135, %v116, 0
    %v143 = vsel %vm135, %v117, 0
    %v146 = vsel %vm135, %v118, 0
    %v149 = vsel %vm135, %v119, 0
    %v152 = vsel %vm135, %v120, 0
    %v155 = vsel %vm135, %v121, 0
    %v158 = vsel %vm135, %v122, 0
    %160 = vmatprep.subr.bf16.mxu0 0
    %161 = vmatpush1.bf16.msra.mxu0 %v131
    %162 = vmatprep.subr.bf16.mxu0 0
    %163 = vmatpush1.bf16.msra.mxu0 %v132
    %164 = vmatprep.subr.bf16.mxu0 0
    %165 = vmatpush1.bf16.msra.mxu0 0
    %166 = vmatprep.subr.bf16.mxu0 0
    %167 = vmatpush1.bf16.msra.mxu0 0
    %168 = vmatprep.subr.bf16.mxu0 0
    %169 = vmatpush1.bf16.msra.mxu0 0
    %170 = vmatprep.subr.bf16.mxu0 0
    %171 = vmatpush1.bf16.msra.mxu0 0
    %172 = vmatprep.subr.bf16.mxu0 0
    %173 = vmatpush1.bf16.msra.mxu0 0
    %174 = vmatprep.subr.bf16.mxu0 0
    %175 = vmatpush1.bf16.msra.mxu0 0
    %176 = vmatprep.subr.bf16.mxu0 0
    %177 = vmatpush1.bf16.msra.mxu0 0
    %178 = vmatprep.subr.bf16.mxu0 0
    %179 = vmatpush1.bf16.msra.mxu0 0
    %180 = vmatprep.subr.bf16.mxu0 0
    %181 = vmatpush1.bf16.msra.mxu0 0
    %182 = vmatprep.subr.bf16.mxu0 0
    %183 = vmatpush1.bf16.msra.mxu0 0
    %184 = vmatprep.subr.bf16.mxu0 0
    %185 = vmatpush1.bf16.msra.mxu0 0
    %186 = vmatprep.subr.bf16.mxu0 0
    %187 = vmatpush1.bf16.msra.mxu0 0
    %188 = vmatprep.subr.bf16.mxu0 0
    %189 = vmatpush1.bf16.msra.mxu0 0
    %190 = vmatprep.subr.bf16.mxu0 0
    %191 = vmatpush1.bf16.msra.mxu0 0
    %192 = vmatprep.mubr.bf16.mxu0 0
    %193 = vmatmul.mubr.bf16.gmra.mrb[0].mxu0 %v137
    %v194 = vpop.f32.mrb[0].mxu0
    %v195 = vadd.f32 0.0, %v194
    %v196 = vpop.f32.mrb[0].mxu0
    %v197 = vpop.f32.mrb[0].mxu0
    %v198 = vadd.f32 0.0, %v197
    %v199 = vpop.f32.mrb[0].mxu0
    %200 = vmatprep.mubr.bf16.mxu0 0
    %201 = vmatmul.mubr.bf16.gmra.mrb[0].mxu0 %v140
    %v202 = vpop.f32.mrb[0].mxu0
    %v203 = vadd.f32 0.0, %v202
    %v204 = vpop.f32.mrb[0].mxu0
    %v205 = vpop.f32.mrb[0].mxu0
    %v206 = vadd.f32 0.0, %v205
    %v207 = vpop.f32.mrb[0].mxu0
    %208 = vmatprep.mubr.bf16.mxu0 0
    %209 = vmatmul.mubr.bf16.gmra.mrb[0].mxu0 %v143
    %v210 = vpop.f32.mrb[0].mxu0
    %v211 = vadd.f32 0.0, %v210
    %v212 = vpop.f32.mrb[0].mxu0
    %v213 = vpop.f32.mrb[0].mxu0
    %v214 = vadd.f32 0.0, %v213
    %v215 = vpop.f32.mrb[0].mxu0
    %216 = vmatprep.mubr.bf16.mxu0 0
    %217 = vmatmul.mubr.bf16.gmra.mrb[0].mxu0 %v146
    %v218 = vpop.f32.mrb[0].mxu0
    %v219 = vadd.f32 0.0, %v218
    %v220 = vpop.f32.mrb[0].mxu0
    %v221 = vpop.f32.mrb[0].mxu0
    %v222 = vadd.f32 0.0, %v221
    %v223 = vpop.f32.mrb[0].mxu0
    %224 = vmatprep.mubr.bf16.mxu0 0
    %225 = vmatmul.mubr.bf16.gmra.mrb[0].mxu0 %v149
    %v226 = vpop.f32.mrb[0].mxu0
    %v227 = vadd.f32 0.0, %v226
    %v228 = vpop.f32.mrb[0].mxu0
    %v229 = vpop.f32.mrb[0].mxu0
    %v230 = vadd.f32 0.0, %v229
    %v231 = vpop.f32.mrb[0].mxu0
    %232 = vmatprep.mubr.bf16.mxu0 0
    %233 = vmatmul.mubr.bf16.gmra.mrb[0].mxu0 %v152
    %v234 = vpop.f32.mrb[0].mxu0
    %v235 = vadd.f32 0.0, %v234
    %v236 = vpop.f32.mrb[0].mxu0
    %v237 = vpop.f32.mrb[0].mxu0
    %v238 = vadd.f32 0.0, %v237
    %v239 = vpop.f32.mrb[0].mxu0
    %240 = vmatprep.mubr.bf16.mxu0 0
    %241 = vmatmul.mubr.bf16.gmra.mrb[0].mxu0 %v155
    %v242 = vpop.f32.mrb[0].mxu0
    %v243 = vadd.f32 0.0, %v242
    %v244 = vpop.f32.mrb[0].mxu0
    %v245 = vpop.f32.mrb[0].mxu0
    %v246 = vadd.f32 0.0, %v245
    %v247 = vpop.f32.mrb[0].mxu0
    %248 = vmatprep.mubr.bf16.mxu0 0
    %249 = vmatmul.mubr.bf16.gmra.mrb[0].mxu0 %v158
    %v250 = vpop.f32.mrb[0].mxu0
    %v251 = vadd.f32 0.0, %v250
    %v252 = vpop.f32.mrb[0].mxu0
    %v253 = vpop.f32.mrb[0].mxu0
    %v254 = vadd.f32 0.0, %v253
    %v255 = vpop.f32.mrb[0].mxu0
    %256 = vdwg.mxu0
    %v257 = vrot.slane %v195, 1
    %v258 = vrot.slane %v203, 1
    %v259 = vrot.slane %v211, 1
    %v260 = vrot.slane %v219, 1
    %v261 = vrot.slane %v227, 1
    %v262 = vrot.slane %v235, 1
    %v263 = vrot.slane %v243, 1
    %v264 = vrot.slane %v251, 1
    %v265 = vrot.slane %v198, 1
    %v266 = vrot.slane %v206, 1
    %v267 = vrot.slane %v214, 1
    %v268 = vrot.slane %v222, 1
    %v269 = vrot.slane %v230, 1
    %v270 = vrot.slane %v238, 1
    %v271 = vrot.slane %v246, 1
    %v272 = vrot.slane %v254, 1
    %v273 = vlaneseq
    %v274 = vshrl.u32 %v273, 7
    %vm275 = vcmp.lt.s32.totalorder %v274, 7
    %v276 = vsel %vm275, %v257, %v265
    %v277 = vsel %vm275, %v258, %v266
    %v278 = vsel %vm275, %v259, %v267
    %v279 = vsel %vm275, %v260, %v268
    %v280 = vsel %vm275, %v261, %v269
    %v281 = vsel %vm275, %v262, %v270
    %v282 = vsel %vm275, %v263, %v271
    %v283 = vsel %vm275, %v264, %v272
    %v284 = vsel %vm275, %v265, %v257
    %v285 = vsel %vm275, %v266, %v258
    %v286 = vsel %vm275, %v267, %v259
    %v287 = vsel %vm275, %v268, %v260
    %v288 = vsel %vm275, %v269, %v261
    %v289 = vsel %vm275, %v270, %v262
    %v290 = vsel %vm275, %v271, %v263
    %v291 = vsel %vm275, %v272, %v264
    %308 = vrot.lane.b32.xlu0 %v276, 104
    %v309 = vpop.permute.xlu0 %308
    %310 = vrot.lane.b32.xlu0 %v284, 104
    %v311 = vpop.permute.xlu0 %310
    %312 = vrot.lane.b32.xlu0 %v277, 104
    %v313 = vpop.permute.xlu0 %312
    %314 = vrot.lane.b32.xlu0 %v285, 104
    %v315 = vpop.permute.xlu0 %314
    %316 = vrot.lane.b32.xlu0 %v278, 104
    %v317 = vpop.permute.xlu0 %316
    %318 = vrot.lane.b32.xlu0 %v286, 104
    %v319 = vpop.permute.xlu0 %318
    %320 = vrot.lane.b32.xlu0 %v279, 104
    %v321 = vpop.permute.xlu0 %320
    %322 = vrot.lane.b32.xlu0 %v287, 104
    %v323 = vpop.permute.xlu0 %322
    %324 = vrot.lane.b32.xlu0 %v280, 104
    %v325 = vpop.permute.xlu0 %324
    %326 = vrot.lane.b32.xlu0 %v288, 104
    %v327 = vpop.permute.xlu0 %326
    %328 = vrot.lane.b32.xlu0 %v281, 104
    %v329 = vpop.permute.xlu0 %328
    %330 = vrot.lane.b32.xlu0 %v289, 104
    %v331 = vpop.permute.xlu0 %330
    %332 = vrot.lane.b32.xlu0 %v282, 104
    %v333 = vpop.permute.xlu0 %332
    %334 = vrot.lane.b32.xlu0 %v290, 104
    %v335 = vpop.permute.xlu0 %334
    %336 = vrot.lane.b32.xlu0 %v283, 104
    %v337 = vpop.permute.xlu0 %336
    %338 = vrot.lane.b32.xlu0 %v291, 104
    %v339 = vpop.permute.xlu0 %338
    %v356 = vadd.f32 %v195, %v309
    %v357 = vadd.f32 %v198, %v311
    %v358 = vadd.f32 %v203, %v313
    %v359 = vadd.f32 %v206, %v315
    %v360 = vadd.f32 %v211, %v317
    %v361 = vadd.f32 %v214, %v319
    %v362 = vadd.f32 %v219, %v321
    %v363 = vadd.f32 %v222, %v323
    %v364 = vadd.f32 %v227, %v325
    %v365 = vadd.f32 %v230, %v327
    %v366 = vadd.f32 %v235, %v329
    %v367 = vadd.f32 %v238, %v331
    %v368 = vadd.f32 %v243, %v333
    %v369 = vadd.f32 %v246, %v335
    %v370 = vadd.f32 %v251, %v337
    %v371 = vadd.f32 %v254, %v339
    %v372 = vrot.slane %v195, 2
    %v373 = vrot.slane %v203, 2
    %v374 = vrot.slane %v211, 2
    %v375 = vrot.slane %v219, 2
    %v376 = vrot.slane %v227, 2
    %v377 = vrot.slane %v235, 2
    %v378 = vrot.slane %v243, 2
    %v379 = vrot.slane %v251, 2
    %v380 = vrot.slane %v198, 2
    %v381 = vrot.slane %v206, 2
    %v382 = vrot.slane %v214, 2
    %v383 = vrot.slane %v222, 2
    %v384 = vrot.slane %v230, 2
    %v385 = vrot.slane %v238, 2
    %v386 = vrot.slane %v246, 2
    %v387 = vrot.slane %v254, 2
    %vm388 = vcmp.lt.s32.totalorder %v274, 6
    %v389 = vsel %vm388, %v372, %v380
    %v390 = vsel %vm388, %v373, %v381
    %v391 = vsel %vm388, %v374, %v382
    %v392 = vsel %vm388, %v375, %v383
    %v393 = vsel %vm388, %v376, %v384
    %v394 = vsel %vm388, %v377, %v385
    %v395 = vsel %vm388, %v378, %v386
    %v396 = vsel %vm388, %v379, %v387
    %v397 = vsel %vm388, %v380, %v372
    %v398 = vsel %vm388, %v381, %v373
    %v399 = vsel %vm388, %v382, %v374
    %v400 = vsel %vm388, %v383, %v375
    %v401 = vsel %vm388, %v384, %v376
    %v402 = vsel %vm388, %v385, %v377
    %v403 = vsel %vm388, %v386, %v378
    %v404 = vsel %vm388, %v387, %v379
    %421 = vrot.lane.b32.xlu0 %v389, 80
    %v422 = vpop.permute.xlu0 %421
    %423 = vrot.lane.b32.xlu0 %v397, 80
    %v424 = vpop.permute.xlu0 %423
    %425 = vrot.lane.b32.xlu0 %v390, 80
    %v426 = vpop.permute.xlu0 %425
    %427 = vrot.lane.b32.xlu0 %v398, 80
    %v428 = vpop.permute.xlu0 %427
    %429 = vrot.lane.b32.xlu0 %v391, 80
    %v430 = vpop.permute.xlu0 %429
    %431 = vrot.lane.b32.xlu0 %v399, 80
    %v432 = vpop.permute.xlu0 %431
    %433 = vrot.lane.b32.xlu0 %v392, 80
    %v434 = vpop.permute.xlu0 %433
    %435 = vrot.lane.b32.xlu0 %v400, 80
    %v436 = vpop.permute.xlu0 %435
    %437 = vrot.lane.b32.xlu0 %v393, 80
    %v438 = vpop.permute.xlu0 %437
    %439 = vrot.lane.b32.xlu0 %v401, 80
    %v440 = vpop.permute.xlu0 %439
    %441 = vrot.lane.b32.xlu0 %v394, 80
    %v442 = vpop.permute.xlu0 %441
    %443 = vrot.lane.b32.xlu0 %v402, 80
    %v444 = vpop.permute.xlu0 %443
    %445 = vrot.lane.b32.xlu0 %v395, 80
    %v446 = vpop.permute.xlu0 %445
    %447 = vrot.lane.b32.xlu0 %v403, 80
    %v448 = vpop.permute.xlu0 %447
    %449 = vrot.lane.b32.xlu0 %v396, 80
    %v450 = vpop.permute.xlu0 %449
    %451 = vrot.lane.b32.xlu0 %v404, 80
    %v452 = vpop.permute.xlu0 %451
    %v469 = vadd.f32 %v356, %v422
    %v470 = vadd.f32 %v357, %v424
    %v471 = vadd.f32 %v358, %v426
    %v472 = vadd.f32 %v359, %v428
    %v473 = vadd.f32 %v360, %v430
    %v474 = vadd.f32 %v361, %v432
    %v475 = vadd.f32 %v362, %v434
    %v476 = vadd.f32 %v363, %v436
    %v477 = vadd.f32 %v364, %v438
    %v478 = vadd.f32 %v365, %v440
    %v479 = vadd.f32 %v366, %v442
    %v480 = vadd.f32 %v367, %v444
    %v481 = vadd.f32 %v368, %v446
    %v482 = vadd.f32 %v369, %v448
    %v483 = vadd.f32 %v370, %v450
    %v484 = vadd.f32 %v371, %v452
    %v485 = vrot.slane %v195, 3
    %v486 = vrot.slane %v203, 3
    %v487 = vrot.slane %v211, 3
    %v488 = vrot.slane %v219, 3
    %v489 = vrot.slane %v227, 3
    %v490 = vrot.slane %v235, 3
    %v491 = vrot.slane %v243, 3
    %v492 = vrot.slane %v251, 3
    %v493 = vrot.slane %v198, 3
    %v494 = vrot.slane %v206, 3
    %v495 = vrot.slane %v214, 3
    %v496 = vrot.slane %v222, 3
    %v497 = vrot.slane %v230, 3
    %v498 = vrot.slane %v238, 3
    %v499 = vrot.slane %v246, 3
    %v500 = vrot.slane %v254, 3
    %vm501 = vcmp.lt.s32.totalorder %v274, 5
    %v502 = vsel %vm501, %v485, %v493
    %v503 = vsel %vm501, %v486, %v494
    %v504 = vsel %vm501, %v487, %v495
    %v505 = vsel %vm501, %v488, %v496
    %v506 = vsel %vm501, %v489, %v497
    %v507 = vsel %vm501, %v490, %v498
    %v508 = vsel %vm501, %v491, %v499
    %v509 = vsel %vm501, %v492, %v500
    %v510 = vsel %vm501, %v493, %v485
    %v511 = vsel %vm501, %v494, %v486
    %v512 = vsel %vm501, %v495, %v487
    %v513 = vsel %vm501, %v496, %v488
    %v514 = vsel %vm501, %v497, %v489
    %v515 = vsel %vm501, %v498, %v490
    %v516 = vsel %vm501, %v499, %v491
    %v517 = vsel %vm501, %v500, %v492
    %534 = vrot.lane.b32.xlu0 %v502, 56
    %v535 = vpop.permute.xlu0 %534
    %536 = vrot.lane.b32.xlu0 %v510, 56
    %v537 = vpop.permute.xlu0 %536
    %538 = vrot.lane.b32.xlu0 %v503, 56
    %v539 = vpop.permute.xlu0 %538
    %540 = vrot.lane.b32.xlu0 %v511, 56
    %v541 = vpop.permute.xlu0 %540
    %542 = vrot.lane.b32.xlu0 %v504, 56
    %v543 = vpop.permute.xlu0 %542
    %544 = vrot.lane.b32.xlu0 %v512, 56
    %v545 = vpop.permute.xlu0 %544
    %546 = vrot.lane.b32.xlu0 %v505, 56
    %v547 = vpop.permute.xlu0 %546
    %548 = vrot.lane.b32.xlu0 %v513, 56
    %v549 = vpop.permute.xlu0 %548
    %550 = vrot.lane.b32.xlu0 %v506, 56
    %v551 = vpop.permute.xlu0 %550
    %552 = vrot.lane.b32.xlu0 %v514, 56
    %v553 = vpop.permute.xlu0 %552
    %554 = vrot.lane.b32.xlu0 %v507, 56
    %v555 = vpop.permute.xlu0 %554
    %556 = vrot.lane.b32.xlu0 %v515, 56
    %v557 = vpop.permute.xlu0 %556
    %558 = vrot.lane.b32.xlu0 %v508, 56
    %v559 = vpop.permute.xlu0 %558
    %560 = vrot.lane.b32.xlu0 %v516, 56
    %v561 = vpop.permute.xlu0 %560
    %562 = vrot.lane.b32.xlu0 %v509, 56
    %v563 = vpop.permute.xlu0 %562
    %564 = vrot.lane.b32.xlu0 %v517, 56
    %v565 = vpop.permute.xlu0 %564
    %v582 = vadd.f32 %v469, %v535
    %v583 = vadd.f32 %v470, %v537
    %v584 = vadd.f32 %v471, %v539
    %v585 = vadd.f32 %v472, %v541
    %v586 = vadd.f32 %v473, %v543
    %v587 = vadd.f32 %v474, %v545
    %v588 = vadd.f32 %v475, %v547
    %v589 = vadd.f32 %v476, %v549
    %v590 = vadd.f32 %v477, %v551
    %v591 = vadd.f32 %v478, %v553
    %v592 = vadd.f32 %v479, %v555
    %v593 = vadd.f32 %v480, %v557
    %v594 = vadd.f32 %v481, %v559
    %v595 = vadd.f32 %v482, %v561
    %v596 = vadd.f32 %v483, %v563
    %v597 = vadd.f32 %v484, %v565
    %v598 = vrot.slane %v195, 4
    %v599 = vrot.slane %v203, 4
    %v600 = vrot.slane %v211, 4
    %v601 = vrot.slane %v219, 4
    %v602 = vrot.slane %v227, 4
    %v603 = vrot.slane %v235, 4
    %v604 = vrot.slane %v243, 4
    %v605 = vrot.slane %v251, 4
    %v606 = vrot.slane %v198, 4
    %v607 = vrot.slane %v206, 4
    %v608 = vrot.slane %v214, 4
    %v609 = vrot.slane %v222, 4
    %v610 = vrot.slane %v230, 4
    %v611 = vrot.slane %v238, 4
    %v612 = vrot.slane %v246, 4
    %v613 = vrot.slane %v254, 4
    %vm614 = vcmp.lt.s32.totalorder %v274, 4
    %v615 = vsel %vm614, %v598, %v606
    %v616 = vsel %vm614, %v599, %v607
    %v617 = vsel %vm614, %v600, %v608
    %v618 = vsel %vm614, %v601, %v609
    %v619 = vsel %vm614, %v602, %v610
    %v620 = vsel %vm614, %v603, %v611
    %v621 = vsel %vm614, %v604, %v612
    %v622 = vsel %vm614, %v605, %v613
    %v623 = vsel %vm614, %v606, %v598
    %v624 = vsel %vm614, %v607, %v599
    %v625 = vsel %vm614, %v608, %v600
    %v626 = vsel %vm614, %v609, %v601
    %v627 = vsel %vm614, %v610, %v602
    %v628 = vsel %vm614, %v611, %v603
    %v629 = vsel %vm614, %v612, %v604
    %v630 = vsel %vm614, %v613, %v605
    %647 = vrot.lane.b32.xlu0 %v615, 32
    %v648 = vpop.permute.xlu0 %647
    %649 = vrot.lane.b32.xlu0 %v623, 32
    %v650 = vpop.permute.xlu0 %649
    %651 = vrot.lane.b32.xlu0 %v616, 32
    %v652 = vpop.permute.xlu0 %651
    %653 = vrot.lane.b32.xlu0 %v624, 32
    %v654 = vpop.permute.xlu0 %653
    %655 = vrot.lane.b32.xlu0 %v617, 32
    %v656 = vpop.permute.xlu0 %655
    %657 = vrot.lane.b32.xlu0 %v625, 32
    %v658 = vpop.permute.xlu0 %657
    %659 = vrot.lane.b32.xlu0 %v618, 32
    %v660 = vpop.permute.xlu0 %659
    %661 = vrot.lane.b32.xlu0 %v626, 32
    %v662 = vpop.permute.xlu0 %661
    %663 = vrot.lane.b32.xlu0 %v619, 32
    %v664 = vpop.permute.xlu0 %663
    %665 = vrot.lane.b32.xlu0 %v627, 32
    %v666 = vpop.permute.xlu0 %665
    %667 = vrot.lane.b32.xlu0 %v620, 32
    %v668 = vpop.permute.xlu0 %667
    %669 = vrot.lane.b32.xlu0 %v628, 32
    %v670 = vpop.permute.xlu0 %669
    %671 = vrot.lane.b32.xlu0 %v621, 32
    %v672 = vpop.permute.xlu0 %671
    %673 = vrot.lane.b32.xlu0 %v629, 32
    %v674 = vpop.permute.xlu0 %673
    %675 = vrot.lane.b32.xlu0 %v622, 32
    %v676 = vpop.permute.xlu0 %675
    %677 = vrot.lane.b32.xlu0 %v630, 32
    %v678 = vpop.permute.xlu0 %677
    %v695 = vadd.f32 %v582, %v648
    %v696 = vadd.f32 %v583, %v650
    %v697 = vadd.f32 %v584, %v652
    %v698 = vadd.f32 %v585, %v654
    %v699 = vadd.f32 %v586, %v656
    %v700 = vadd.f32 %v587, %v658
    %v701 = vadd.f32 %v588, %v660
    %v702 = vadd.f32 %v589, %v662
    %v703 = vadd.f32 %v590, %v664
    %v704 = vadd.f32 %v591, %v666
    %v705 = vadd.f32 %v592, %v668
    %v706 = vadd.f32 %v593, %v670
    %v707 = vadd.f32 %v594, %v672
    %v708 = vadd.f32 %v595, %v674
    %v709 = vadd.f32 %v596, %v676
    %v710 = vadd.f32 %v597, %v678
    %v711 = vld [vmem:[%s2] sm:$0x1]
    %v713 = vlaneseq
    %v714 = vshrl.u32 %v713, 7
    %v715 = vsub.s32 0, %v714
    %v716 = vrot.slane %v711, %v715
    %v718 = vadd.f32 %v695, %v716
    %v719 = vadd.f32 %v696, %v716
    %v720 = vadd.f32 %v697, %v716
    %v721 = vadd.f32 %v698, %v716
    %v722 = vadd.f32 %v699, %v716
    %v723 = vadd.f32 %v700, %v716
    %v724 = vadd.f32 %v701, %v716
    %v725 = vadd.f32 %v702, %v716
    %v726 = vadd.f32 %v703, %v716
    %v727 = vadd.f32 %v704, %v716
    %v728 = vadd.f32 %v705, %v716
    %v729 = vadd.f32 %v706, %v716
    %v730 = vadd.f32 %v707, %v716
    %v731 = vadd.f32 %v708, %v716
    %v732 = vadd.f32 %v709, %v716
    %v733 = vadd.f32 %v710, %v716
    %v734 = vmax.f32 %v718, 0.0
    %v735 = vmax.f32 %v719, 0.0
    %v736 = vmax.f32 %v720, 0.0
    %v737 = vmax.f32 %v721, 0.0
    %v738 = vmax.f32 %v722, 0.0
    %v739 = vmax.f32 %v723, 0.0
    %v740 = vmax.f32 %v724, 0.0
    %v741 = vmax.f32 %v725, 0.0
    %v742 = vmax.f32 %v726, 0.0
    %v743 = vmax.f32 %v727, 0.0
    %v744 = vmax.f32 %v728, 0.0
    %v745 = vmax.f32 %v729, 0.0
    %v746 = vmax.f32 %v730, 0.0
    %v747 = vmax.f32 %v731, 0.0
    %v748 = vmax.f32 %v732, 0.0
    %v749 = vmax.f32 %v733, 0.0
    %v750 = vadd.s32 %v274, 8
    %v751 = vlaneseq
    %v752 = vand.u32 %v751, 127
    %vm753 = vcmp.ge.s32.totalorder %v752, 0
    %vm754 = vcmp.lt.s32.totalorder %v752, 8
    %vm755 = vmand %vm753, %vm754
    %vm756 = vcmp.lt.s32.totalorder %v274, 14
    %vm757 = vcmp.lt.s32.totalorder %v750, 14
    %vm758 = vmand %vm755, %vm756
    %vm759 = vmand %vm755, %vm757
    %vm760 = vcmp.ge.s32.totalorder %v752, 8
    %vm761 = vcmp.lt.s32.totalorder %v752, 16
    %vm762 = vmand %vm760, %vm761
    %vm763 = vcmp.lt.s32.totalorder %v274, 13
    %vm764 = vcmp.lt.s32.totalorder %v750, 13
    %vm765 = vmand %vm762, %vm763
    %vm766 = vmand %vm762, %vm764
    %vm767 = vcmp.ge.s32.totalorder %v752, 16
    %vm768 = vcmp.lt.s32.totalorder %v752, 24
    %vm769 = vmand %vm767, %vm768
    %vm770 = vcmp.lt.s32.totalorder %v274, 12
    %vm771 = vcmp.lt.s32.totalorder %v750, 12
    %vm772 = vmand %vm769, %vm770
    %vm773 = vmand %vm769, %vm771
    %vm774 = vmor %vm758, %vm765
    %vm775 = vmor %vm759, %vm766
    %vm776 = vmor %vm774, %vm772
    %vm777 = vmor %vm775, %vm773
    %v778 = vsel %vm776, 1, 0
    %v779 = vsel %vm777, 1, 0
    %vm780 = vcmp.eq.s32.totalorder %v778, 1
    %vm781 = vcmp.eq.s32.totalorder %v779, 1
    %v782 = vsel %vm780, %v734, 0.0
    %v783 = vsel %vm781, %v735, 0.0
    %v784 = vsel %vm780, %v736, 0.0
    %v785 = vsel %vm781, %v737, 0.0
    %v786 = vsel %vm780, %v738, 0.0
    %v787 = vsel %vm781, %v739, 0.0
    %v788 = vsel %vm780, %v740, 0.0
    %v789 = vsel %vm781, %v741, 0.0
    %v790 = vsel %vm780, %v742, 0.0
    %v791 = vsel %vm781, %v743, 0.0
    %v792 = vsel %vm780, %v744, 0.0
    %v793 = vsel %vm781, %v745, 0.0
    %v794 = vsel %vm780, %v746, 0.0
    %v795 = vsel %vm781, %v747, 0.0
    %v796 = vsel %vm780, %v748, 0.0
    %v797 = vsel %vm781, %v749, 0.0
    %vm798 = vcmask 195584
    %v799 = vsel %vm798, %v782, -inf
    %v800 = vsel %vm798, %v783, -inf
    %v801 = vmax.f32 %v799, %v800
    %v802 = vrot.slane %v801, 4
    %v803 = vmax.f32 %v801, %v802
    %v804 = vrot.slane %v803, 2
    %v805 = vmax.f32 %v803, %v804
    %v806 = vrot.slane %v805, 1
    %v807 = vmax.f32 %v805, %v806
    %v808 = vsel %vm798, %v784, -inf
    %v809 = vsel %vm798, %v785, -inf
    %v810 = vmax.f32 %v808, %v809
    %v811 = vrot.slane %v810, 4
    %v812 = vmax.f32 %v810, %v811
    %v813 = vrot.slane %v812, 2
    %v814 = vmax.f32 %v812, %v813
    %v815 = vrot.slane %v814, 1
    %v816 = vmax.f32 %v814, %v815
    %v817 = vsel %vm798, %v786, -inf
    %v818 = vsel %vm798, %v787, -inf
    %v819 = vmax.f32 %v817, %v818
    %v820 = vrot.slane %v819, 4
    %v821 = vmax.f32 %v819, %v820
    %v822 = vrot.slane %v821, 2
    %v823 = vmax.f32 %v821, %v822
    %v824 = vrot.slane %v823, 1
    %v825 = vmax.f32 %v823, %v824
    %v826 = vsel %vm798, %v788, -inf
    %v827 = vsel %vm798, %v789, -inf
    %v828 = vmax.f32 %v826, %v827
    %v829 = vrot.slane %v828, 4
    %v830 = vmax.f32 %v828, %v829
    %v831 = vrot.slane %v830, 2
    %v832 = vmax.f32 %v830, %v831
    %v833 = vrot.slane %v832, 1
    %v834 = vmax.f32 %v832, %v833
    %v835 = vsel %vm798, %v790, -inf
    %v836 = vsel %vm798, %v791, -inf
    %v837 = vmax.f32 %v835, %v836
    %v838 = vrot.slane %v837, 4
    %v839 = vmax.f32 %v837, %v838
    %v840 = vrot.slane %v839, 2
    %v841 = vmax.f32 %v839, %v840
    %v842 = vrot.slane %v841, 1
    %v843 = vmax.f32 %v841, %v842
    %v844 = vsel %vm798, %v792, -inf
    %v845 = vsel %vm798, %v793, -inf
    %v846 = vmax.f32 %v844, %v845
    %v847 = vrot.slane %v846, 4
    %v848 = vmax.f32 %v846, %v847
    %v849 = vrot.slane %v848, 2
    %v850 = vmax.f32 %v848, %v849
    %v851 = vrot.slane %v850, 1
    %v852 = vmax.f32 %v850, %v851
    %v853 = vsel %vm798, %v794, -inf
    %v854 = vsel %vm798, %v795, -inf
    %v855 = vmax.f32 %v853, %v854
    %v856 = vrot.slane %v855, 4
    %v857 = vmax.f32 %v855, %v856
    %v858 = vrot.slane %v857, 2
    %v859 = vmax.f32 %v857, %v858
    %v860 = vrot.slane %v859, 1
    %v861 = vmax.f32 %v859, %v860
    %v862 = vsel %vm798, %v796, -inf
    %v863 = vsel %vm798, %v797, -inf
    %v864 = vmax.f32 %v862, %v863
    %v865 = vrot.slane %v864, 4
    %v866 = vmax.f32 %v864, %v865
    %v867 = vrot.slane %v866, 2
    %v868 = vmax.f32 %v866, %v867
    %v869 = vrot.slane %v868, 1
    %v870 = vmax.f32 %v868, %v869
    %v871 = vld [vmem:[#allocation7] sm:$0xff]
    %v872 = vld [vmem:[#allocation7 + $0x8] sm:$0xff]
    %v873 = vld [vmem:[#allocation7 + $0x10] sm:$0xff]
    %v874 = vld [vmem:[%s4] sm:$0x1]
    %v876 = vlaneseq
    %v877 = vshrl.u32 %v876, 7
    %v878 = vsub.s32 0, %v877
    %v879 = vrot.slane %v874, %v878
    %vm889 = vcmask 1041409
    %v890 = vsel %vm889, %v816, %v807
    %vm891 = vcmask 1042434
    %v892 = vsel %vm891, %v825, %v890
    %vm893 = vcmask 1043459
    %v894 = vsel %vm893, %v834, %v892
    %vm895 = vcmask 1044484
    %v896 = vsel %vm895, %v843, %v894
    %vm897 = vcmask 1045509
    %v898 = vsel %vm897, %v852, %v896
    %vm899 = vcmask 1046534
    %v900 = vsel %vm899, %v861, %v898
    %vm901 = vcmask 1047559
    %v902 = vsel %vm901, %v870, %v900
    %v903 = vsel %vm798, %v902, 0
    %905 = vmatprep.subr.mxu0 0.0
    %906 = vmatpush1.msra.mxu0 %v871
    %907 = vmatprep.subr.mxu0 0.0
    %908 = vmatpush1.msra.mxu0 %v872
    %909 = vmatprep.subr.mxu0 0.0
    %910 = vmatpush1.msra.mxu0 %v873
    %911 = vmatprep.subr.mxu0 0.0
    %912 = vmatpush1.msra.mxu0 0.0
    %913 = vmatprep.subr.mxu0 0.0
    %914 = vmatpush1.msra.mxu0 0.0
    %915 = vmatprep.subr.mxu0 0.0
    %916 = vmatpush1.msra.mxu0 0.0
    %917 = vmatprep.subr.mxu0 0.0
    %918 = vmatpush1.msra.mxu0 0.0
    %919 = vmatprep.subr.mxu0 0.0
    %920 = vmatpush1.msra.mxu0 0.0
    %921 = vmatprep.subr.mxu0 0.0
    %922 = vmatpush1.msra.mxu0 0.0
    %923 = vmatprep.subr.mxu0 0.0
    %924 = vmatpush1.msra.mxu0 0.0
    %925 = vmatprep.subr.mxu0 0.0
    %926 = vmatpush1.msra.mxu0 0.0
    %927 = vmatprep.subr.mxu0 0.0
    %928 = vmatpush1.msra.mxu0 0.0
    %929 = vmatprep.subr.mxu0 0.0
    %930 = vmatpush1.msra.mxu0 0.0
    %931 = vmatprep.subr.mxu0 0.0
    %932 = vmatpush1.msra.mxu0 0.0
    %933 = vmatprep.subr.mxu0 0.0
    %934 = vmatpush1.msra.mxu0 0.0
    %935 = vmatprep.subr.mxu0 0.0
    %936 = vmatpush1.msra.mxu0 0.0
    %937 = vmatprep.subr.mxu0 0.0
    %938 = vmatpush1.msra.mxu0 0.0
    %939 = vmatprep.subr.mxu0 0.0
    %940 = vmatpush1.msra.mxu0 0.0
    %941 = vmatprep.subr.mxu0 0.0
    %942 = vmatpush1.msra.mxu0 0.0
    %943 = vmatprep.subr.mxu0 0.0
    %944 = vmatpush1.msra.mxu0 0.0
    %945 = vmatprep.subr.mxu0 0.0
    %946 = vmatpush1.msra.mxu0 0.0
    %947 = vmatprep.subr.mxu0 0.0
    %948 = vmatpush1.msra.mxu0 0.0
    %949 = vmatprep.subr.mxu0 0.0
    %950 = vmatpush1.msra.mxu0 0.0
    %951 = vmatprep.subr.mxu0 0.0
    %952 = vmatpush1.msra.mxu0 0.0
    %953 = vmatprep.subr.mxu0 0.0
    %954 = vmatpush1.msra.mxu0 0.0
    %955 = vmatprep.subr.mxu0 0.0
    %956 = vmatpush1.msra.mxu0 0.0
    %957 = vmatprep.subr.mxu0 0.0
    %958 = vmatpush1.msra.mxu0 0.0
    %959 = vmatprep.subr.mxu0 0.0
    %960 = vmatpush1.msra.mxu0 0.0
    %961 = vmatprep.subr.mxu0 0.0
    %962 = vmatpush1.msra.mxu0 0.0
    %963 = vmatprep.subr.mxu0 0.0
    %964 = vmatpush1.msra.mxu0 0.0
    %965 = vmatprep.subr.mxu0 0.0
    %966 = vmatpush1.msra.mxu0 0.0
    %967 = vmatprep.subr.mxu0 0.0
    %968 = vmatpush1.msra.mxu0 0.0
    %969 = vmatprep.mubr.f32.mxu0 0.0
    %970 = vmatmul.mubr.f32.gmra.mrb[0].mxu0 %v903
    %v971 = vpop.f32.mrb[0].mxu0
    %v972 = vadd.f32 %v879, %v971
    %v973 = vpop.f32.mrb[0].mxu0
    %974 = vdwg.mxu0
    %975 = vst [vmem:[#allocation8] sm:$0xff] %v972
    // Predicated region
    $region34: #{tpu_custom_call.1} parent=1 // pred_check
      _
    $region35: #{tpu_custom_call.1} parent=1 // pred_check_branch
      %977 = sbr.rel (0) target = $region37
    $region36: #{tpu_custom_call.1} parent=1 // pred_region
      %s979 = ssub.s32 128, 128
      %980 = vsyncadd [#allocation4], %s979
      %s982 = sshll.u32 [#allocation8], 4
      %s983 = int_to_ptr.vmem [resolvable:$true] %s982
      %985 = dma.vmem_to_hbm [thread:$0]  %s983, 128, %s5, [#allocation4]
    $region37: #{tpu_custom_call.1} parent=1 // pred_fallthru
      _
    // Predicated region
    $region38: #{tpu_custom_call.1} parent=1 // pred_check
      _
    $region39: #{tpu_custom_call.1} parent=1 // pred_check_branch
      %987 = sbr.rel (0) target = $region41
    $region40: #{tpu_custom_call.1} parent=1 // pred_region
      %988 = dma.done [#allocation4], 128
    $region41: #{tpu_custom_call.1} parent=1 // pred_fallthru
      _
    %989 = vsyncpa [#allocation3], 1
    %990 = vsyncpa [#allocation6], 1
    %991 = vsyncpa [#allocation4], 1

</llo_original>
